<compile_context>
chip_gen: v7x
topology: tpu7x:2x2x1
jax: 0.10.0
libtpu: 0.0.40
codegen_flags: <defaults>
</compile_context>

<pallas_src>
import functools

import jax
import jax.numpy as jnp
from jax.experimental import pallas as pl
from jax.experimental.pallas import tpu as pltpu


# ----------------------------- Pallas kernel --------------------------------
def deepsic_kernel(rx_ref, w1_ref, w2_ref, out_ref):
    # rx_ref : (LIN_PAD, TB)      bf16  [features ; ones-row ; zero pad] x batch
    # w1_ref : (HID_AUG, LIN_PAD) bf16  [W1 | b1] + bias pass-through row (resident)
    # w2_ref : (CLASSES, HID_AUG) f32   [W2 | b2] (fc2 kept fully in f32, resident)
    # out_ref: (CLASSES, TB)      f32   lane-dense output tile
    h = jnp.dot(w1_ref[...], rx_ref[...], preferred_element_type=jnp.float32)
    h = jnp.maximum(h, 0.0)  # ReLU in f32; pass-through unit yields exactly 1.0
    out_ref[...] = jnp.dot(w2_ref[...], h, preferred_element_type=jnp.float32)


# ------------------------------ Tiling choice --------------------------------
def _choose_tiling(batch, max_tile=32768):
    """Lane-dense batch tiling.

    - per-step rx DMA targets >= ~0.5 MiB (max_tile=32768 lanes of bf16 x 8 rows)
      so the fixed ~0.35us/step pipeline overhead is amortised (all generations);
    - when more than one tile is needed, force an even tile count (>=2) so the
      'parallel' grid axis keeps both v7x TensorCores busy;
    - tiny batches collapse to 1-2 tiles of 128 (overhead is negligible there).
    """
    b128 = max(128, ((batch + 127) // 128) * 128)
    if b128 <= 256:
        tile_b = 128
        n_tiles = b128 // 128
    else:
        n_tiles = max(2, pl.cdiv(b128, max_tile))
        if n_tiles % 2:
            n_tiles += 1
        tile_b = ((pl.cdiv(b128, n_tiles) + 127) // 128) * 128
    return tile_b, n_tiles


# ------------------------------ Host wrapper ---------------------------------
@functools.partial(jax.jit, static_argnames=("max_tile", "compute_dtype"))
def deepsic_forward(rx, w1, b1, w2, b2, *, max_tile=32768, compute_dtype=jnp.bfloat16):
    """rx: [B, linear_input] f32; weights in PyTorch [out, in] layout.

    Returns logits [B, classes_num] f32 (same semantics as the nn.Module)."""
    B, lin_in = rx.shape
    hidden = w1.shape[0]
    classes = w2.shape[0]

    tile_b, n_tiles = _choose_tiling(B, max_tile)
    B_pad = tile_b * n_tiles

    # Contraction dim: lin_in features + 1 ones-row (fc1 bias), padded to 8.
    lin_pad = ((lin_in + 1 + 7) // 8) * 8
    # Hidden dim: hidden units + 1 bias pass-through unit (fc2 bias), padded to 8.
    hid_aug = ((hidden + 1 + 7) // 8) * 8

    # rx^T with the ones row; zero-pad remaining rows and padded batch lanes.
    rxT = jnp.zeros((lin_pad, B_pad), jnp.float32)
    rxT = rxT.at[:lin_in, :B].set(rx.T)
    rxT = rxT.at[lin_in, :].set(1.0)

    # W1 augmented: [W1 | b1] rows, plus row `hidden` = e_{lin_in} so that
    # h[hidden] = relu(1*1) = 1 exactly (carries the fc2 bias through fc1/ReLU).
    w1aug = jnp.zeros((hid_aug, lin_pad), jnp.float32)
    w1aug = w1aug.at[:hidden, :lin_in].set(w1)
    w1aug = w1aug.at[:hidden, lin_in].set(b1)
    w1aug = w1aug.at[hidden, lin_in].set(1.0)

    # W2 augmented with b2 in column `hidden`; kept in f32 (exact fc2).
    w2aug = jnp.zeros((classes, hid_aug), jnp.float32)
    w2aug = w2aug.at[:, :hidden].set(w2)
    w2aug = w2aug.at[:, hidden].set(b2)

    rxT_c = rxT.astype(compute_dtype)    # streamed input: bf16
    w1_c = w1aug.astype(compute_dtype)   # resident, bf16 MXU operand
    w2_c = w2aug                         # resident, f32

    outT = pl.pallas_call(
        deepsic_kernel,
        out_shape=jax.ShapeDtypeStruct((classes, B_pad), jnp.float32),
        grid_spec=pltpu.PrefetchScalarGridSpec(
            num_scalar_prefetch=0,
            grid=(n_tiles,),
            in_specs=[
                pl.BlockSpec((lin_pad, tile_b), lambda i: (0, i)),    # rx^T (streamed)
                pl.BlockSpec((hid_aug, lin_pad), lambda i: (0, 0)),   # [W1|b1|1] (resident)
                pl.BlockSpec((classes, hid_aug), lambda i: (0, 0)),   # [W2|b2]   (resident)
            ],
            out_specs=pl.BlockSpec((classes, tile_b), lambda i: (0, i)),
        ),
        compiler_params=pltpu.CompilerParams(
            # Batch axis is independent: megacore / v7x's two TCs split the grid.
            dimension_semantics=("parallel",),
            # VMEM/step: 2*(lin_pad*2B + classes*4B)*tile_b + resident weights
            # < ~2 MiB even at tile_b=32768 -> well under every generation's limit.
        ),
    )(rxT_c, w1_c, w2_c)

    # Strip batch padding; return in the module's [B, classes] orientation.
    # (Downstream consumers that can take [classes, B] should use outT directly.)
    return outT[:, :B].T


# ------------------------- Deterministic param init --------------------------
def init_params(key, lin_in, hidden, classes):
    """nn.Linear default init: U(-1/sqrt(fan_in), 1/sqrt(fan_in)); [out, in] layout."""
    k1, k2, k3, k4 = jax.random.split(key, 4)
    bound1 = 1.0 / jnp.sqrt(jnp.float32(lin_in))
    bound2 = 1.0 / jnp.sqrt(jnp.float32(hidden))
    w1 = jax.random.uniform(k1, (hidden, lin_in), jnp.float32, -bound1, bound1)
    b1 = jax.random.uniform(k2, (hidden,), jnp.float32, -bound1, bound1)
    w2 = jax.random.uniform(k3, (classes, hidden), jnp.float32, -bound2, bound2)
    b2 = jax.random.uniform(k4, (classes,), jnp.float32, -bound2, bound2)
    return w1, b1, w2, b2


def reference_forward_bf16(rx, w1, b1, w2, b2, compute_dtype=jnp.bfloat16):
    """Pure-JAX reference mirroring the kernel's bf16 rounding of rx/W1/b1 only."""
    c = lambda a: a.astype(compute_dtype).astype(jnp.float32)
    h = jnp.maximum(c(rx) @ c(w1).T + c(b1), 0.0)
    return h @ w2.T + b2


def reference_forward_f32(rx, w1, b1, w2, b2):
    """Exact f32 semantics of the PyTorch module."""
    return jnp.maximum(rx @ w1.T + b1, 0.0) @ w2.T + b2


if __name__ == "__main__":
    # Config (BPSK): classes=2, hidden_base=16 -> hidden=32, n_ant=4, n_user=4
    CLASSES = 2
    HIDDEN = 16 * CLASSES                            # 32
    N_ANT = 4
    N_USER = 4
    LIN_IN = N_ANT + (CLASSES - 1) * (N_USER - 1)    # 7
    BATCH = 256                                      # -> 2 lane-dense tiles of 128

    key = jax.random.PRNGKey(0)
    k_rx, k_par = jax.random.split(key)
    rx = jax.random.normal(k_rx, (BATCH, LIN_IN), jnp.float32)
    w1, b1, w2, b2 = init_params(k_par, LIN_IN, HIDDEN, CLASSES)

    out = deepsic_forward(rx, w1, b1, w2, b2)
    out = jax.block_until_ready(out)
    assert out.shape == (BATCH, CLASSES)

    # Tight check vs a reference mirroring the kernel's only rounding (bf16 rx/W1/b1).
    ref_bf16 = reference_forward_bf16(rx, w1, b1, w2, b2)
    assert jnp.allclose(out, ref_bf16, atol=2e-3, rtol=2e-3), "mismatch vs bf16-mirrored ref"

    # Loose check vs the exact f32 module semantics (bounds the bf16 streaming error).
    ref_f32 = reference_forward_f32(rx, w1, b1, w2, b2)
    assert jnp.allclose(out, ref_f32, atol=5e-2, rtol=5e-2), "mismatch vs f32 module ref"

    print("KERNEL_OK")
</pallas_src>

<mosaic_0001>
module attributes {stable_mosaic.version = 11 : i64} {
  func.func @deepsic_kernel(%arg0: i32, %arg1: memref<8x128xbf16, #tpu.memory_space<vmem>>, %arg2: memref<40x8xbf16, #tpu.memory_space<vmem>>, %arg3: memref<2x40xf32, #tpu.memory_space<vmem>>, %arg4: memref<2x128xf32, #tpu.memory_space<vmem>>) attributes {dimension_semantics = [#tpu.dimension_semantics<parallel>], iteration_bounds = array<i64: 2>, scalar_prefetch = 0 : i64, scratch_operands = 0 : i64, tpu.core_type = #tpu.core_type<tc>, window_params = [{transform_indices = @transform_0, window_bounds = array<i64: 8, 128>}, {pipeline_mode = #tpu.pipeline_mode<synchronous>, transform_indices = @transform_1, window_bounds = array<i64: 40, 8>}, {pipeline_mode = #tpu.pipeline_mode<synchronous>, transform_indices = @transform_2, window_bounds = array<i64: 2, 40>}, {transform_indices = @transform_3, window_bounds = array<i64: 2, 128>}]} {
    %c0 = arith.constant 0 : index
    %c0_0 = arith.constant 0 : index
    %0 = vector.load %arg2[%c0, %c0_0] : memref<40x8xbf16, #tpu.memory_space<vmem>>, vector<40x8xbf16>
    %c0_1 = arith.constant 0 : index
    %c0_2 = arith.constant 0 : index
    %1 = vector.load %arg1[%c0_1, %c0_2] : memref<8x128xbf16, #tpu.memory_space<vmem>>, vector<8x128xbf16>
    %cst = arith.constant dense<0.000000e+00> : vector<40x128xf32>
    %2 = tpu.matmul %0, %1, %cst {dimension_numbers = #tpu.dot_dimension_numbers<[1], [0], [0], [1], [0, 0, 1, 1], [], []>} : vector<40x8xbf16>, vector<8x128xbf16>, vector<40x128xf32> -> vector<40x128xf32>
    %cst_3 = arith.constant 0.000000e+00 : f32
    %3 = vector.broadcast %cst_3 : f32 to vector<40x128xf32>
    %4 = arith.maximumf %2, %3 : vector<40x128xf32>
    %c0_4 = arith.constant 0 : index
    %c0_5 = arith.constant 0 : index
    %5 = vector.load %arg3[%c0_4, %c0_5] : memref<2x40xf32, #tpu.memory_space<vmem>>, vector<2x40xf32>
    %cst_6 = arith.constant dense<0.000000e+00> : vector<2x128xf32>
    %6 = tpu.matmul %5, %4, %cst_6 {dimension_numbers = #tpu.dot_dimension_numbers<[1], [0], [0], [1], [0, 0, 1, 1], [], []>} : vector<2x40xf32>, vector<40x128xf32>, vector<2x128xf32> -> vector<2x128xf32>
    %c0_7 = arith.constant 0 : index
    %c0_8 = arith.constant 0 : index
    %7 = vector.load %arg4[%c0_7, %c0_8] : memref<2x128xf32, #tpu.memory_space<vmem>>, vector<2x128xf32>
    tpu.vector_store %arg4[%c0_7, %c0_8], %6 {strides = array<i32>} : memref<2x128xf32, #tpu.memory_space<vmem>>, vector<2x128xf32>,
    return
  }
  func.func @transform_0(%arg0: i32) -> (i32, i32) {
    %c0_i32 = arith.constant 0 : i32
    %c0_i32_0 = arith.constant 0 : i32
    return %c0_i32, %arg0 : i32, i32
  }
  func.func @transform_1(%arg0: i32) -> (i32, i32) {
    %c0_i32 = arith.constant 0 : i32
    %c0_i32_0 = arith.constant 0 : i32
    %c0_i32_1 = arith.constant 0 : i32
    return %c0_i32, %c0_i32_0 : i32, i32
  }
  func.func @transform_2(%arg0: i32) -> (i32, i32) {
    %c0_i32 = arith.constant 0 : i32
    %c0_i32_0 = arith.constant 0 : i32
    %c0_i32_1 = arith.constant 0 : i32
    return %c0_i32, %c0_i32_0 : i32, i32
  }
  func.func @transform_3(%arg0: i32) -> (i32, i32) {
    %c0_i32 = arith.constant 0 : i32
    %c0_i32_0 = arith.constant 0 : i32
    return %c0_i32, %arg0 : i32, i32
  }
}

</mosaic_0001>

<llo_original>
// kernel: deepsic_forward.1
$region0: #{deepsic_forward.1}
  #allocation0 [shape = 'u32[]', space=smem, size = 0x4, offset = 0x4, fixed_abs, tag = 'smem constant byte address 0x4 - core index']
  #allocation1 [shape = 'u32[144,128]{1,0:T(1,128)}', space=vmem, size = 0x12000, scoped, tag = 'internal scratch']
  %s0 = inlined_call_operand.vmem [shape: bf16[8,256], index: 0, kind: input, shape index: {}]
  %s1 = inlined_call_operand.vmem [shape: bf16[40,8], index: 1, kind: input, shape index: {}]
  %s2 = inlined_call_operand.vmem [shape: f32[2,40], index: 2, kind: input, shape index: {}]
  %s3 = inlined_call_operand.hbm [shape: f32[2,256], index: 3, kind: output, shape index: {}]
  %s4 = sld [smem:[#allocation0]]
  $region45: #{deepsic_forward.1} parent=0
    _
  %s6 = ssub.s32 1, %s4
  %s7 = scalar_select 0, %s6, %s4
  $region1: #{deepsic_forward.1} parent=0
    #allocation2 [shape = 'u8[2048]{0}', space=vmem, size = 0x800, scoped, tag = 'output window, operand 0']
    #allocation3 [shape = 's32[2]{0}', space=sflag, size = 0x8, scoped, tag = 'scoped memory for deepsic_forward.1']
    %8 = vsyncpa [#allocation3], 0
    %s9 = scalar_lea.sflag [#allocation3], 1
    %10 = vsyncpa %s9, 0
    loop: start=0, step=1, limit=4
    $region2: #{deepsic_forward.1} parent=1 // loop_pre_header
      _
    $region3: #{deepsic_forward.1} parent=1 // loop_header
      %s12 = sphi 0, %s16
      %p13 = scmp.ge.s32.totalorder %s12, 4
      %s22 = sphi 0, %s24
      %s25 = sphi 0, %s22
      %s26 = sphi 0, %s25
      %s42 = sphi 0, %s26
      %s46 = sphi 0, %s46
      %s48 = sphi 0, %s46
      %s49 = sphi 0, %s48
      %s63 = sphi 0, %s49
      %s67 = sphi 0, %s67
      %s69 = sphi 0, %s67
      %s70 = sphi 0, %s69
      %s84 = sphi 0, %s70
      %s90 = sphi 0, %s92
      %s93 = sphi 0, %s90
      %s94 = sphi 0, %s93
      %s110 = sphi 0, %s94
    $region4: #{deepsic_forward.1} parent=1 // loop_header_branch
      %15 = sbr.rel (%p13) target = $region8
    $region5: #{deepsic_forward.1} parent=1 // loop_body
      %s17 = ssub.s32 %s12, 1
      %s18 = ssub.s32 %s12, 2
      %s19 = sadd.s32 %s12, 1
      %s20 = ssub.s32 %s12, %s19
      %p21 = scmp.eq.s32.totalorder %s20, 0
      %s23 = sadd.s32 %s22, 1
      %s24 = scalar_select %p21, %s22, %s23
      %p27 = pneg %p21
      %p28 = scmp.eq.s32.totalorder %s12, 1
      %p29 = por %p27, %p28
      %p30 = scmp.ne.s32.totalorder %s22, %s25
      %p31 = scmp.eq.s32.totalorder %s12, 0
      %p32 = por %p30, %p31
      %p33 = scmp.ne.s32.totalorder %s22, %s25
      %p34 = scmp.eq.s32.totalorder %s17, 1
      %p35 = por %p33, %p34
      %p36 = scmp.ne.s32.totalorder %s25, %s26
      %p37 = scmp.eq.s32.totalorder %s17, 0
      %p38 = por %p36, %p37
      %p39 = scmp.ne.s32.totalorder %s25, %s26
      %p40 = scmp.eq.s32.totalorder %s18, 1
      %p41 = por %p39, %p40
      %p43 = scmp.ne.s32.totalorder %s26, %s42
      %p44 = scmp.eq.s32.totalorder %s18, 0
      %p45 = por %p43, %p44
      %s47 = sadd.s32 %s46, 1
      %p50 = scmp.eq.s32.totalorder %s12, 1
      %p51 = scmp.ne.s32.totalorder %s46, %s48
      %p52 = scmp.eq.s32.totalorder %s12, 0
      %p53 = por %p51, %p52
      %p54 = scmp.ne.s32.totalorder %s46, %s48
      %p55 = scmp.eq.s32.totalorder %s17, 1
      %p56 = por %p54, %p55
      %p57 = scmp.ne.s32.totalorder %s48, %s49
      %p58 = scmp.eq.s32.totalorder %s17, 0
      %p59 = por %p57, %p58
      %p60 = scmp.ne.s32.totalorder %s48, %s49
      %p61 = scmp.eq.s32.totalorder %s18, 1
      %p62 = por %p60, %p61
      %p64 = scmp.ne.s32.totalorder %s49, %s63
      %p65 = scmp.eq.s32.totalorder %s18, 0
      %p66 = por %p64, %p65
      %s68 = sadd.s32 %s67, 1
      %p71 = scmp.eq.s32.totalorder %s12, 1
      %p72 = scmp.ne.s32.totalorder %s67, %s69
      %p73 = scmp.eq.s32.totalorder %s12, 0
      %p74 = por %p72, %p73
      %p75 = scmp.ne.s32.totalorder %s67, %s69
      %p76 = scmp.eq.s32.totalorder %s17, 1
      %p77 = por %p75, %p76
      %p78 = scmp.ne.s32.totalorder %s69, %s70
      %p79 = scmp.eq.s32.totalorder %s17, 0
      %p80 = por %p78, %p79
      %p81 = scmp.ne.s32.totalorder %s69, %s70
      %p82 = scmp.eq.s32.totalorder %s18, 1
      %p83 = por %p81, %p82
      %p85 = scmp.ne.s32.totalorder %s70, %s84
      %p86 = scmp.eq.s32.totalorder %s18, 0
      %p87 = por %p85, %p86
      %s88 = ssub.s32 %s12, %s19
      %p89 = scmp.eq.s32.totalorder %s88, 0
      %s91 = sadd.s32 %s90, 1
      %s92 = scalar_select %p89, %s90, %s91
      %p95 = pneg %p89
      %p96 = scmp.eq.s32.totalorder %s12, 1
      %p97 = por %p95, %p96
      %p98 = scmp.ne.s32.totalorder %s90, %s93
      %p99 = scmp.eq.s32.totalorder %s12, 0
      %p100 = por %p98, %p99
      %p101 = scmp.ne.s32.totalorder %s90, %s93
      %p102 = scmp.eq.s32.totalorder %s17, 1
      %p103 = por %p101, %p102
      %p104 = scmp.ne.s32.totalorder %s93, %s94
      %p105 = scmp.eq.s32.totalorder %s17, 0
      %p106 = por %p104, %p105
      %p107 = scmp.ne.s32.totalorder %s93, %s94
      %p108 = scmp.eq.s32.totalorder %s18, 1
      %p109 = por %p107, %p108
      %p111 = scmp.ne.s32.totalorder %s94, %s110
      %p112 = scmp.eq.s32.totalorder %s18, 0
      %p113 = por %p111, %p112
      %p114 = scmp.le.s32.totalorder 1, %s12
      %p115 = scmp.lt.s32.totalorder %s12, 3
      %p116 = pnand %p114, %p115
      %p117 = pneg %p116
      // Predicated region
      $region9: #{deepsic_forward.1} parent=5 // pred_check
        _
      $region10: #{deepsic_forward.1} parent=5 // pred_check_branch
        %119 = sbr.rel (%p116) target = $region12
      $region11: #{deepsic_forward.1} parent=5 // pred_region
        %s120 = ssub.s32 %s12, 1
        // Predicated region
        $region13: #{deepsic_forward.1} parent=11 // pred_check
          %p121 = pneg %p59
        $region14: #{deepsic_forward.1} parent=11 // pred_check_branch
          %123 = sbr.rel (%p121) target = $region16
        $region15: #{deepsic_forward.1} parent=11 // pred_region
          _
        $region16: #{deepsic_forward.1} parent=11 // pred_fallthru
          _
        // Predicated region
        $region17: #{deepsic_forward.1} parent=11 // pred_check
          %p124 = pneg %p80
        $region18: #{deepsic_forward.1} parent=11 // pred_check_branch
          %126 = sbr.rel (%p124) target = $region20
        $region19: #{deepsic_forward.1} parent=11 // pred_region
          _
        $region20: #{deepsic_forward.1} parent=11 // pred_fallthru
          _
      $region12: #{deepsic_forward.1} parent=5 // pred_fallthru
        _
      %p127 = scmp.lt.s32.totalorder %s12, 2
      // Predicated region
      $region21: #{deepsic_forward.1} parent=5 // pred_check
        %p128 = pneg %p127
      $region22: #{deepsic_forward.1} parent=5 // pred_check_branch
        %130 = sbr.rel (%p128) target = $region24
      $region23: #{deepsic_forward.1} parent=5 // pred_region
        // Predicated region
        $region25: #{deepsic_forward.1} parent=23 // pred_check
          %p131 = pneg %p32
        $region26: #{deepsic_forward.1} parent=23 // pred_check_branch
          %133 = sbr.rel (%p131) target = $region28
        $region27: #{deepsic_forward.1} parent=23 // pred_region
          %p134 = scmp.lt.s32.totalorder %s12, 1
          %s135 = scalar_select %p134, %s12, 1
          %s136 = smul.addr %s135, 4
          %s137 = scalar_lea.vmem %s0, %s136
        $region28: #{deepsic_forward.1} parent=23 // pred_fallthru
          _
      $region24: #{deepsic_forward.1} parent=5 // pred_fallthru
        _
      %p138 = scmp.le.s32.totalorder 1, %s12
      %p139 = scmp.lt.s32.totalorder %s12, 3
      %p140 = pnand %p138, %p139
      %p141 = pneg %p140
      // Predicated region
      $region29: #{deepsic_forward.1} parent=5 // pred_check
        _
      $region30: #{deepsic_forward.1} parent=5 // pred_check_branch
        %143 = sbr.rel (%p140) target = $region32
      $region31: #{deepsic_forward.1} parent=5 // pred_region
        %s144 = ssub.s32 %s12, 1
        %p145 = scmp.lt.s32.totalorder %s17, 1
        %s146 = scalar_select %p145, %s17, 1
        %s147 = smul.addr %s146, 4
        %s148 = scalar_lea.vmem %s0, %s147
        %p149 = pneg %p38
        %p150 = pneg %p35
        %p151 = pneg %p59
        %p152 = pneg %p56
        %p153 = pneg %p80
        %p154 = pneg %p77
        %p155 = pneg %p106
        %p156 = pneg %p103
        %s157 = sand.u32 %s93, 1
        %s158 = scalar_lea.sflag [#allocation3], %s157
        %s159 = sand.u32 %s93, 1
        %s160 = smul.addr %s159, 2
        %s161 = scalar_lea.vmem [#allocation2], %s160
        %p162 = scmp.lt.s32.totalorder %s17, 1
        %s163 = scalar_select %p162, %s17, 1
        %s164 = smul.addr %s163, 4
        %s165 = scalar_lea.vmem %s0, %s164
        %v167 = vld [vmem:[%s1] sm:$0xf]
        %v168 = vld [vmem:[%s1 + $0x4] sm:$0xf]
        %v169 = vld [vmem:[%s1 + $0x8] sm:$0xf]
        %v170 = vld [vmem:[%s1 + $0xc] sm:$0xf]
        %v171 = vld [vmem:[%s1 + $0x10] sm:$0xf]
        %v172 = vld [vmem:[%s165] sm:$0xf]
        %v178 = vunpack.c.l.b16 %v167
        %v179 = vunpack.c.l.b16 %v168
        %v180 = vunpack.c.l.b16 %v169
        %v181 = vunpack.c.l.b16 %v170
        %v182 = vunpack.c.l.b16 %v171
        %v183 = vpack.c.b16 %v179, %v178
        %v184 = vpack.c.b16 %v181, %v180
        %v185 = vpack.c.b16 %v182, %v182
        %vm186 = vcmask 64512
        %v188 = vsel %vm186, %v183, 0
        %v191 = vsel %vm186, %v184, 0
        %v194 = vsel %vm186, %v185, 0
        %vm196 = vcmask 1043456
        %v198 = vsel %vm196, %v172, 0
        %200 = vmatprep.subr.bf16.mxu0 0
        %201 = vmatpush1.bf16.msra.mxu0 %v198
        %202 = vmatprep.subr.bf16.mxu0 0
        %203 = vmatpush1.bf16.msra.mxu0 0
        %204 = vmatprep.subr.bf16.mxu0 0
        %205 = vmatpush1.bf16.msra.mxu0 0
        %206 = vmatprep.subr.bf16.mxu0 0
        %207 = vmatpush1.bf16.msra.mxu0 0
        %208 = vmatprep.subr.bf16.mxu0 0
        %209 = vmatpush1.bf16.msra.mxu0 0
        %210 = vmatprep.subr.bf16.mxu0 0
        %211 = vmatpush1.bf16.msra.mxu0 0
        %212 = vmatprep.subr.bf16.mxu0 0
        %213 = vmatpush1.bf16.msra.mxu0 0
        %214 = vmatprep.subr.bf16.mxu0 0
        %215 = vmatpush1.bf16.msra.mxu0 0
        %216 = vmatprep.subr.bf16.mxu0 0
        %217 = vmatpush1.bf16.msra.mxu0 0
        %218 = vmatprep.subr.bf16.mxu0 0
        %219 = vmatpush1.bf16.msra.mxu0 0
        %220 = vmatprep.subr.bf16.mxu0 0
        %221 = vmatpush1.bf16.msra.mxu0 0
        %222 = vmatprep.subr.bf16.mxu0 0
        %223 = vmatpush1.bf16.msra.mxu0 0
        %224 = vmatprep.subr.bf16.mxu0 0
        %225 = vmatpush1.bf16.msra.mxu0 0
        %226 = vmatprep.subr.bf16.mxu0 0
        %227 = vmatpush1.bf16.msra.mxu0 0
        %228 = vmatprep.subr.bf16.mxu0 0
        %229 = vmatpush1.bf16.msra.mxu0 0
        %230 = vmatprep.subr.bf16.mxu0 0
        %231 = vmatpush1.bf16.msra.mxu0 0
        %232 = vmatprep.mubr.bf16.mxu0 0
        %233 = vmatmul.mubr.bf16.gmra.mrb[0].mxu0 %v188
        %v234 = vpop.f32.mrb[0].mxu0
        %v235 = vadd.f32 0.0, %v234
        %v236 = vpop.f32.mrb[0].mxu0
        %v237 = vpop.f32.mrb[0].mxu0
        %v238 = vadd.f32 0.0, %v237
        %v239 = vpop.f32.mrb[0].mxu0
        %240 = vmatprep.mubr.bf16.mxu0 0
        %241 = vmatmul.mubr.bf16.gmra.mrb[0].mxu0 %v191
        %v242 = vpop.f32.mrb[0].mxu0
        %v243 = vadd.f32 0.0, %v242
        %v244 = vpop.f32.mrb[0].mxu0
        %v245 = vpop.f32.mrb[0].mxu0
        %v246 = vadd.f32 0.0, %v245
        %v247 = vpop.f32.mrb[0].mxu0
        %248 = vmatprep.mubr.bf16.mxu0 0
        %249 = vmatmul.mubr.bf16.gmra.mrb[0].mxu0 %v194
        %v250 = vpop.f32.mrb[0].mxu0
        %v251 = vadd.f32 0.0, %v250
        %v252 = vpop.f32.mrb[0].mxu0
        %v253 = vpop.f32.mrb[0].mxu0
        %v254 = vpop.f32.mrb[0].mxu0
        %255 = vdwg.mxu0
        %v256 = vmax.f32 %v235, 0.0
        %v257 = vmax.f32 %v238, 0.0
        %v258 = vmax.f32 %v243, 0.0
        %v259 = vmax.f32 %v246, 0.0
        %v260 = vmax.f32 %v251, 0.0
        %v261 = vld [vmem:[%s2] sm:$0x3]
        %vm262 = vcmask 326656
        %v264 = vsel %vm262, %v261, 0
        %266 = vmatprep.subr.mxu0 0.0
        %267 = vmatpush1.msra.mxu0 %v256
        %268 = vmatprep.subr.mxu0 0.0
        %269 = vmatpush1.msra.mxu0 %v257
        %270 = vmatprep.subr.mxu0 0.0
        %271 = vmatpush1.msra.mxu0 %v258
        %272 = vmatprep.subr.mxu0 0.0
        %273 = vmatpush1.msra.mxu0 %v259
        %274 = vmatprep.subr.mxu0 0.0
        %275 = vmatpush1.msra.mxu0 %v260
        %276 = vmatprep.subr.mxu0 0.0
        %277 = vmatpush1.msra.mxu0 0.0
        %278 = vmatprep.subr.mxu0 0.0
        %279 = vmatpush1.msra.mxu0 0.0
        %280 = vmatprep.subr.mxu0 0.0
        %281 = vmatpush1.msra.mxu0 0.0
        %282 = vmatprep.subr.mxu0 0.0
        %283 = vmatpush1.msra.mxu0 0.0
        %284 = vmatprep.subr.mxu0 0.0
        %285 = vmatpush1.msra.mxu0 0.0
        %286 = vmatprep.subr.mxu0 0.0
        %287 = vmatpush1.msra.mxu0 0.0
        %288 = vmatprep.subr.mxu0 0.0
        %289 = vmatpush1.msra.mxu0 0.0
        %290 = vmatprep.subr.mxu0 0.0
        %291 = vmatpush1.msra.mxu0 0.0
        %292 = vmatprep.subr.mxu0 0.0
        %293 = vmatpush1.msra.mxu0 0.0
        %294 = vmatprep.subr.mxu0 0.0
        %295 = vmatpush1.msra.mxu0 0.0
        %296 = vmatprep.subr.mxu0 0.0
        %297 = vmatpush1.msra.mxu0 0.0
        %298 = vmatprep.subr.mxu0 0.0
        %299 = vmatpush1.msra.mxu0 0.0
        %300 = vmatprep.subr.mxu0 0.0
        %301 = vmatpush1.msra.mxu0 0.0
        %302 = vmatprep.subr.mxu0 0.0
        %303 = vmatpush1.msra.mxu0 0.0
        %304 = vmatprep.subr.mxu0 0.0
        %305 = vmatpush1.msra.mxu0 0.0
        %306 = vmatprep.subr.mxu0 0.0
        %307 = vmatpush1.msra.mxu0 0.0
        %308 = vmatprep.subr.mxu0 0.0
        %309 = vmatpush1.msra.mxu0 0.0
        %310 = vmatprep.subr.mxu0 0.0
        %311 = vmatpush1.msra.mxu0 0.0
        %312 = vmatprep.subr.mxu0 0.0
        %313 = vmatpush1.msra.mxu0 0.0
        %314 = vmatprep.subr.mxu0 0.0
        %315 = vmatpush1.msra.mxu0 0.0
        %316 = vmatprep.subr.mxu0 0.0
        %317 = vmatpush1.msra.mxu0 0.0
        %318 = vmatprep.subr.mxu0 0.0
        %319 = vmatpush1.msra.mxu0 0.0
        %320 = vmatprep.subr.mxu0 0.0
        %321 = vmatpush1.msra.mxu0 0.0
        %322 = vmatprep.subr.mxu0 0.0
        %323 = vmatpush1.msra.mxu0 0.0
        %324 = vmatprep.subr.mxu0 0.0
        %325 = vmatpush1.msra.mxu0 0.0
        %326 = vmatprep.subr.mxu0 0.0
        %327 = vmatpush1.msra.mxu0 0.0
        %328 = vmatprep.subr.mxu0 0.0
        %329 = vmatpush1.msra.mxu0 0.0
        %330 = vmatprep.mubr.f32.mxu0 0.0
        %331 = vmatmul.mubr.f32.gmra.mrb[0].mxu0 %v264
        %v332 = vpop.f32.mrb[0].mxu0
        %v333 = vadd.f32 0.0, %v332
        %v334 = vpop.f32.mrb[0].mxu0
        %335 = vdwg.mxu0
        %336 = vst [vmem:[%s161] sm:$0x3] %v333
        %s337 = sand.u32 %s93, 1
        %s338 = scalar_lea.sflag [#allocation3], %s337
        %s339 = sand.u32 %s93, 1
        %s340 = smul.addr %s339, 2
        %s341 = scalar_lea.vmem [#allocation2], %s340
        // Predicated region
        $region33: #{deepsic_forward.1} parent=31 // pred_check
          %p342 = pneg %p103
        $region34: #{deepsic_forward.1} parent=31 // pred_check_branch
          %344 = sbr.rel (%p342) target = $region36
        $region35: #{deepsic_forward.1} parent=31 // pred_region
          %s346 = ssub.s32 32, 32
          %347 = vsyncadd %s338, %s346
          %s348 = smul.addr %s17, 32
          %s349 = scalar_lea.hbm %s3, %s348
          %s351 = sshll.u32 %s341, 4
          %s352 = int_to_ptr.vmem [resolvable:$true] %s351
          %354 = dma.vmem_to_hbm [thread:$0]  %s352, 32, %s349, %s338
        $region36: #{deepsic_forward.1} parent=31 // pred_fallthru
          _
      $region32: #{deepsic_forward.1} parent=5 // pred_fallthru
        _
      %p355 = scmp.le.s32.totalorder 2, %s12
      // Predicated region
      $region37: #{deepsic_forward.1} parent=5 // pred_check
        %p356 = pneg %p355
      $region38: #{deepsic_forward.1} parent=5 // pred_check_branch
        %358 = sbr.rel (%p356) target = $region40
      $region39: #{deepsic_forward.1} parent=5 // pred_region
        %s359 = ssub.s32 %s12, 2
        // Predicated region
        $region41: #{deepsic_forward.1} parent=39 // pred_check
          %p360 = pneg %p109
        $region42: #{deepsic_forward.1} parent=39 // pred_check_branch
          %362 = sbr.rel (%p360) target = $region44
        $region43: #{deepsic_forward.1} parent=39 // pred_region
          %s363 = sand.u32 %s94, 1
          %s364 = scalar_lea.sflag [#allocation3], %s363
          %s365 = sand.u32 %s94, 1
          %s366 = smul.addr %s365, 2
          %s367 = scalar_lea.vmem [#allocation2], %s366
          %368 = dma.done %s364, 32
        $region44: #{deepsic_forward.1} parent=39 // pred_fallthru
          _
      $region40: #{deepsic_forward.1} parent=5 // pred_fallthru
        _
    $region6: #{deepsic_forward.1} parent=1 // loop_footer
      %s16 = sadd.s32 1, %s12
    $region7: #{deepsic_forward.1} parent=1 // loop_footer_branch
      %11 = sbr.rel target = $region3
    $region8: #{deepsic_forward.1} parent=1 // loop_exit
      _
    %369 = vsyncpa [#allocation3], 1
    %s370 = scalar_lea.sflag [#allocation3], 1
    %371 = vsyncpa %s370, 1

</llo_original>
